<compile_context>
chip_gen: v5e
topology: v5e:2x2
jax: 0.10.0
libtpu: 0.0.40
codegen_flags: <defaults>
</compile_context>

<pallas_src>
import math
import functools

import jax
import jax.numpy as jnp
from jax.experimental import pallas as pl
from jax.experimental.pallas import tpu as pltpu


# ---------------------------------------------------------------------------
# helpers
# ---------------------------------------------------------------------------

def _cast_fn(matmul_dtype):
    if matmul_dtype is None:
        return lambda a: a
    return lambda a: a.astype(matmul_dtype)


def _pick_tile(n, cap):
    """Largest divisor of n that is <= cap and a multiple of 8; else n (full)."""
    if n <= cap:
        return n
    t = (cap // 8) * 8
    while t >= 8:
        if n % t == 0:
            return t
        t -= 8
    return n


def _pick_head_group(num_heads, head_dim):
    """Smallest head group whose lane width is a multiple of 128 so every
    q/k/v/ctx group slice starts on a 128-lane boundary (GPT-2: head_dim=64 ->
    2 heads / 128 lanes).  Falls back to all heads (gw == E, always layout
    legal) for tiny test shapes."""
    for hg in range(1, num_heads):
        if num_heads % hg == 0 and (hg * head_dim) % 128 == 0:
            return hg
    return num_heads


def _vmem_limit_bytes(block_bytes):
    """Generation-aware scoped-VMEM hint (v5e/v6e: 128 MiB, v7x: 64 MiB)."""
    try:
        info = pltpu.get_tpu_info()
        cap = int(getattr(info, "vmem_capacity_bytes", 64 * 1024 * 1024))
    except Exception:
        cap = 64 * 1024 * 1024                   # conservative (v7x-sized)
    ceiling = (cap * 7) // 8                     # headroom for compiler scratch
    want = 2 * block_bytes + (8 << 20)           # double-buffer + activations
    return int(min(max(want, 32 << 20), ceiling))


# ---------------------------------------------------------------------------
# kernels
# ---------------------------------------------------------------------------

def _qkv_kernel(x_ref, w_ref, b_ref, q_ref, k_ref, v_ref, *, head_dim,
                matmul_dtype):
    """qkv = x @ W_qkv + b; q is pre-scaled by 1/sqrt(head_dim)."""
    cast = _cast_fn(matmul_dtype)
    E = x_ref.shape[1]
    qkv = jnp.dot(cast(x_ref[...]), cast(w_ref[...]),
                  preferred_element_type=jnp.float32) + b_ref[...]
    q_ref[...] = (qkv[:, :E] * (1.0 / math.sqrt(head_dim))).astype(q_ref.dtype)
    k_ref[...] = qkv[:, E:2 * E].astype(k_ref.dtype)
    v_ref[...] = qkv[:, 2 * E:].astype(v_ref.dtype)


def _flash_attn_kernel(q_ref, k_ref, v_ref, bias_ref, o_ref,
                       m_sc, l_sc, acc_sc, *, heads_per_group, head_dim,
                       tq, tk, matmul_dtype):
    """Online-softmax attention over one (batch, head-group, q-tile) block,
    iterating kv tiles along the innermost ("arbitrary") grid axis."""
    cast = _cast_fn(matmul_dtype)
    qi = pl.program_id(2)
    kv = pl.program_id(3)
    n_kv = pl.num_programs(3)
    q_start = qi * tq
    k_start = kv * tk

    @pl.when(kv == 0)
    def _init():
        m_sc[...] = jnp.full_like(m_sc, -jnp.inf)
        l_sc[...] = jnp.zeros_like(l_sc)
        acc_sc[...] = jnp.zeros_like(acc_sc)

    # Causal block skip: a kv tile entirely above the diagonal contributes
    # nothing (saves ~half the attention MXU + exp work for prefill).
    @pl.when(k_start <= q_start + tq - 1)
    def _compute():
        q = q_ref[0]                        # (tq, gw), already / sqrt(head_dim)
        k = k_ref[0]                        # (tk, gw)
        v = v_ref[0]                        # (tk, gw)
        bias = bias_ref[...]                # (tq, tk) f32, additive attn bias
        rows = q_start + jax.lax.broadcasted_iota(jnp.int32, (tq, tk), 0)
        cols = k_start + jax.lax.broadcasted_iota(jnp.int32, (tq, tk), 1)
        allowed = cols <= rows
        qkt = (((1,), (1,)), ((), ()))      # contract last dims -> no k.T

        for h in range(heads_per_group):    # 2 heads per group at GPT-2 shapes
            lo = h * head_dim
            hi = lo + head_dim
            s = jax.lax.dot_general(cast(q[:, lo:hi]), cast(k[:, lo:hi]),
                                    dimension_numbers=qkt,
                                    preferred_element_type=jnp.float32)
            s = s + bias
            # Reference semantics: masked scores are REPLACED with -1e9.
            s = jnp.where(allowed, s, jnp.float32(-1e9))

            m_prev = m_sc[h]                                       # (tq, 1)
            m_new = jnp.maximum(m_prev, jnp.max(s, axis=-1, keepdims=True))
            alpha = jnp.exp(m_prev - m_new)
            p = jnp.exp(s - m_new)                                 # f32 (tq,tk)
            l_sc[h] = alpha * l_sc[h] + jnp.sum(p, axis=-1, keepdims=True)
            acc_sc[:, lo:hi] = alpha * acc_sc[:, lo:hi] + jnp.dot(
                cast(p), cast(v[:, lo:hi]), preferred_element_type=jnp.float32)
            m_sc[h] = m_new

    @pl.when(kv == n_kv - 1)
    def _finalize():
        for h in range(heads_per_group):
            lo = h * head_dim
            hi = lo + head_dim
            # Exact reciprocal for the f32 test; EUP approx when running bf16.
            inv_l = pl.reciprocal(l_sc[h], approx=(matmul_dtype is not None))
            acc_sc[:, lo:hi] = acc_sc[:, lo:hi] * inv_l
        o_ref[0] = acc_sc[...].astype(o_ref.dtype)   # one lane-dense store


def _proj_kernel(x_ref, w_ref, b_ref, o_ref, *, matmul_dtype):
    """Output projection: one contraction-E matmul (near-peak MXU fill)."""
    cast = _cast_fn(matmul_dtype)
    out = jnp.dot(cast(x_ref[...]), cast(w_ref[...]),
                  preferred_element_type=jnp.float32) + b_ref[...]
    o_ref[...] = out.astype(o_ref.dtype)


# ---------------------------------------------------------------------------
# wrapper
# ---------------------------------------------------------------------------

def prefill_gpt2_attention(hidden_states, params, num_heads, matmul_dtype=None,
                           row_tile=256, q_tile=256, kv_tile=256):
    B, S, E = hidden_states.shape
    head_dim = E // num_heads
    dtype = hidden_states.dtype
    dsz = jnp.dtype(dtype).itemsize

    w_qkv = params["c_attn_w"]                              # (E, 3E)
    b_qkv = params["c_attn_b"].reshape(1, 3 * E).astype(jnp.float32)
    w_proj = params["c_proj_w"]                             # (E, E)
    b_proj = params["c_proj_b"].reshape(1, E).astype(jnp.float32)
    if matmul_dtype is not None:
        # Pre-cast weights once (halves weight VMEM/HBM traffic); f32 accum.
        w_qkv = w_qkv.astype(matmul_dtype)
        w_proj = w_proj.astype(matmul_dtype)
    wsz = jnp.dtype(w_qkv.dtype).itemsize
    bias = params["attn_bias"][:S, :S].astype(jnp.float32)  # additive bias

    # ---- stage 1: QKV projection (also produces the KV cache) -------------
    R = B * S
    tm = _pick_tile(R, row_tile)
    x2 = hidden_states.reshape(R, E)
    qkv_bytes = (tm * E * dsz + E * 3 * E * wsz + 3 * E * 4
                 + 3 * tm * E * dsz + tm * 3 * E * 4)
    q2, k2, v2 = pl.pallas_call(
        functools.partial(_qkv_kernel, head_dim=head_dim,
                          matmul_dtype=matmul_dtype),
        out_shape=(jax.ShapeDtypeStruct((R, E), dtype),) * 3,
        grid=(R // tm,),
        in_specs=[
            pl.BlockSpec((tm, E), lambda i: (i, 0)),
            pl.BlockSpec((E, 3 * E), lambda i: (0, 0)),
            pl.BlockSpec((1, 3 * E), lambda i: (0, 0)),
        ],
        out_specs=(pl.BlockSpec((tm, E), lambda i: (i, 0)),) * 3,
        compiler_params=pltpu.CompilerParams(
            dimension_semantics=("parallel",),
            vmem_limit_bytes=_vmem_limit_bytes(qkv_bytes)),
    )(x2, w_qkv, b_qkv)
    cache_k = k2.reshape(B, S, E)
    cache_v = v2.reshape(B, S, E)
    q = q2.reshape(B, S, E)

    # ---- stage 2: flash-style causal attention -----------------------------
    hg = _pick_head_group(num_heads, head_dim)
    gw = hg * head_dim
    n_groups = num_heads // hg
    tq = _pick_tile(S, q_tile)
    tk = _pick_tile(S, kv_tile)
    flash_bytes = ((tq + 2 * tk) * gw * dsz + tq * tk * 4 + tq * gw * dsz
                   + tq * gw * 4 + 2 * hg * tq * 4 + 2 * tq * tk * 4)
    ctx = pl.pallas_call(
        functools.partial(_flash_attn_kernel, heads_per_group=hg,
                          head_dim=head_dim, tq=tq, tk=tk,
                          matmul_dtype=matmul_dtype),
        out_shape=jax.ShapeDtypeStruct((B, S, E), dtype),
        grid=(B, n_groups, S // tq, S // tk),
        in_specs=[
            pl.BlockSpec((1, tq, gw), lambda b, g, i, j: (b, i, g)),   # q
            pl.BlockSpec((1, tk, gw), lambda b, g, i, j: (b, j, g)),   # k
            pl.BlockSpec((1, tk, gw), lambda b, g, i, j: (b, j, g)),   # v
            pl.BlockSpec((tq, tk), lambda b, g, i, j: (i, j)),         # bias
        ],
        out_specs=pl.BlockSpec((1, tq, gw), lambda b, g, i, j: (b, i, g)),
        scratch_shapes=[
            pltpu.VMEM((hg, tq, 1), jnp.float32),   # running max
            pltpu.VMEM((hg, tq, 1), jnp.float32),   # running sum
            pltpu.VMEM((tq, gw), jnp.float32),      # context accumulator
        ],
        compiler_params=pltpu.CompilerParams(
            dimension_semantics=("parallel", "parallel", "parallel",
                                 "arbitrary"),
            vmem_limit_bytes=_vmem_limit_bytes(flash_bytes)),
    )(q, cache_k, cache_v, bias)

    # ---- stage 3: output projection ----------------------------------------
    ctx2 = ctx.reshape(R, E)
    proj_bytes = (2 * tm * E * dsz + E * E * wsz + E * 4 + tm * E * 4)
    out2 = pl.pallas_call(
        functools.partial(_proj_kernel, matmul_dtype=matmul_dtype),
        out_shape=jax.ShapeDtypeStruct((R, E), dtype),
        grid=(R // tm,),
        in_specs=[
            pl.BlockSpec((tm, E), lambda i: (i, 0)),
            pl.BlockSpec((E, E), lambda i: (0, 0)),
            pl.BlockSpec((1, E), lambda i: (0, 0)),
        ],
        out_specs=pl.BlockSpec((tm, E), lambda i: (i, 0)),
        compiler_params=pltpu.CompilerParams(
            dimension_semantics=("parallel",),
            vmem_limit_bytes=_vmem_limit_bytes(proj_bytes)),
    )(ctx2, w_proj, b_proj)
    output = out2.reshape(B, S, E)

    # resid_dropout is identity at inference.
    return output, (cache_k, cache_v)


# ---------------------------------------------------------------------------
# pure-JAX reference (replica of PrefillGPT2Attention.forward, eval mode)
# ---------------------------------------------------------------------------

def reference_jax(hidden_states, params, num_heads):
    B, S, E = hidden_states.shape
    D = E // num_heads
    x = hidden_states.reshape(-1, E)
    qkv = x @ params["c_attn_w"] + params["c_attn_b"]
    q, k, v = jnp.split(qkv, 3, axis=-1)
    cache_k = k.reshape(B, S, E)
    cache_v = v.reshape(B, S, E)
    q = q.reshape(B, S, num_heads, D).transpose(0, 2, 1, 3)
    kk = k.reshape(B, S, num_heads, D).transpose(0, 2, 1, 3)
    vv = v.reshape(B, S, num_heads, D).transpose(0, 2, 1, 3)
    scores = jnp.einsum('bhqd,bhkd->bhqk', q, kk) / math.sqrt(D)
    scores = scores + params["attn_bias"][:S, :S][None, None]
    mask = jnp.tril(jnp.ones((S, S)))
    scores = jnp.where(mask[None, None] == 0, jnp.float32(-1e9), scores)
    attn = jax.nn.softmax(scores, axis=-1)
    ctx = jnp.einsum('bhqk,bhkd->bhqd', attn, vv)
    ctx = ctx.transpose(0, 2, 1, 3).reshape(B, S, E)
    out = ctx @ params["c_proj_w"] + params["c_proj_b"]
    return out, (cache_k, cache_v)


if __name__ == "__main__":
    # Small config: n_ctx=16, n_embd=32, num_attention_heads=4, seq_len=8, B=2.
    # (Tiles collapse to full extents here; the tiling logic only engages at
    # real GPT-2 shapes, e.g. S>=512, E=768, head_dim=64.)
    B, S, E, H, N_CTX = 2, 8, 32, 4, 16

    key = jax.random.PRNGKey(0)
    k0, k1, k2, k3, k4, k5 = jax.random.split(key, 6)

    hidden_states = jax.random.normal(k0, (B, S, E), dtype=jnp.float32)

    params = {
        # h.{i}.attn.bias squeezed to (n_ctx, n_ctx), used as additive bias
        "attn_bias": 0.1 * jax.random.normal(k1, (N_CTX, N_CTX), dtype=jnp.float32),
        # c_attn: effective x @ W + b with W: (E, 3E)
        "c_attn_w": 0.02 * jax.random.normal(k2, (E, 3 * E), dtype=jnp.float32),
        "c_attn_b": 0.02 * jax.random.normal(k3, (3 * E,), dtype=jnp.float32),
        # c_proj: W: (E, E)
        "c_proj_w": 0.02 * jax.random.normal(k4, (E, E), dtype=jnp.float32),
        "c_proj_b": 0.02 * jax.random.normal(k5, (E,), dtype=jnp.float32),
    }

    out, (ck, cv) = prefill_gpt2_attention(hidden_states, params, H)
    jax.block_until_ready(out)
    jax.block_until_ready(ck)
    jax.block_until_ready(cv)

    ref_out, (ref_ck, ref_cv) = reference_jax(hidden_states, params, H)

    assert out.shape == (B, S, E) and ck.shape == (B, S, E) and cv.shape == (B, S, E)
    assert jnp.allclose(out, ref_out, atol=1e-4, rtol=1e-4)
    assert jnp.allclose(ck, ref_ck, atol=1e-4, rtol=1e-4)
    assert jnp.allclose(cv, ref_cv, atol=1e-4, rtol=1e-4)

    print("KERNEL_OK")
</pallas_src>

<mosaic_0001>
module attributes {stable_mosaic.version = 11 : i64} {
  func.func @_qkv_kernel(%arg0: i32, %arg1: memref<16x32xf32, #tpu.memory_space<vmem>>, %arg2: memref<32x96xf32, #tpu.memory_space<vmem>>, %arg3: memref<1x96xf32, #tpu.memory_space<vmem>>, %arg4: memref<16x32xf32, #tpu.memory_space<vmem>>, %arg5: memref<16x32xf32, #tpu.memory_space<vmem>>, %arg6: memref<16x32xf32, #tpu.memory_space<vmem>>) attributes {dimension_semantics = [#tpu.dimension_semantics<parallel>], iteration_bounds = array<i64: 1>, scalar_prefetch = 0 : i64, scratch_operands = 0 : i64, tpu.core_type = #tpu.core_type<tc>, window_params = [{transform_indices = @transform_0, window_bounds = array<i64: 16, 32>}, {pipeline_mode = #tpu.pipeline_mode<synchronous>, transform_indices = @transform_1, window_bounds = array<i64: 32, 96>}, {pipeline_mode = #tpu.pipeline_mode<synchronous>, transform_indices = @transform_2, window_bounds = array<i64: 1, 96>}, {transform_indices = @transform_3, window_bounds = array<i64: 16, 32>}, {transform_indices = @transform_4, window_bounds = array<i64: 16, 32>}, {transform_indices = @transform_5, window_bounds = array<i64: 16, 32>}]} {
    %c0 = arith.constant 0 : index
    %c0_0 = arith.constant 0 : index
    %0 = vector.load %arg1[%c0, %c0_0] : memref<16x32xf32, #tpu.memory_space<vmem>>, vector<16x32xf32>
    %c0_1 = arith.constant 0 : index
    %c0_2 = arith.constant 0 : index
    %1 = vector.load %arg2[%c0_1, %c0_2] : memref<32x96xf32, #tpu.memory_space<vmem>>, vector<32x96xf32>
    %cst = arith.constant dense<0.000000e+00> : vector<16x96xf32>
    %2 = tpu.matmul %0, %1, %cst {dimension_numbers = #tpu.dot_dimension_numbers<[1], [0], [0], [1], [0, 0, 1, 1], [], []>} : vector<16x32xf32>, vector<32x96xf32>, vector<16x96xf32> -> vector<16x96xf32>
    %c0_3 = arith.constant 0 : index
    %c0_4 = arith.constant 0 : index
    %3 = vector.load %arg3[%c0_3, %c0_4] : memref<1x96xf32, #tpu.memory_space<vmem>>, vector<1x96xf32>
    %4 = vector.broadcast %3 : vector<1x96xf32> to vector<16x96xf32>
    %5 = arith.addf %2, %4 : vector<16x96xf32>
    %6 = vector.extract_strided_slice %5 {offsets = [0, 0], sizes = [16, 32], strides = [1, 1]} : vector<16x96xf32> to vector<16x32xf32>
    %cst_5 = arith.constant 0.353553385 : f32
    %7 = vector.broadcast %cst_5 : f32 to vector<16x32xf32>
    %8 = arith.mulf %6, %7 : vector<16x32xf32>
    %c0_6 = arith.constant 0 : index
    %c0_7 = arith.constant 0 : index
    %9 = vector.load %arg4[%c0_6, %c0_7] : memref<16x32xf32, #tpu.memory_space<vmem>>, vector<16x32xf32>
    tpu.vector_store %arg4[%c0_6, %c0_7], %8 {strides = array<i32>} : memref<16x32xf32, #tpu.memory_space<vmem>>, vector<16x32xf32>,
    %10 = vector.extract_strided_slice %5 {offsets = [0, 32], sizes = [16, 32], strides = [1, 1]} : vector<16x96xf32> to vector<16x32xf32>
    %c0_8 = arith.constant 0 : index
    %c0_9 = arith.constant 0 : index
    %11 = vector.load %arg5[%c0_8, %c0_9] : memref<16x32xf32, #tpu.memory_space<vmem>>, vector<16x32xf32>
    tpu.vector_store %arg5[%c0_8, %c0_9], %10 {strides = array<i32>} : memref<16x32xf32, #tpu.memory_space<vmem>>, vector<16x32xf32>,
    %12 = vector.extract_strided_slice %5 {offsets = [0, 64], sizes = [16, 32], strides = [1, 1]} : vector<16x96xf32> to vector<16x32xf32>
    %c0_10 = arith.constant 0 : index
    %c0_11 = arith.constant 0 : index
    %13 = vector.load %arg6[%c0_10, %c0_11] : memref<16x32xf32, #tpu.memory_space<vmem>>, vector<16x32xf32>
    tpu.vector_store %arg6[%c0_10, %c0_11], %12 {strides = array<i32>} : memref<16x32xf32, #tpu.memory_space<vmem>>, vector<16x32xf32>,
    return
  }
  func.func @transform_0(%arg0: i32) -> (i32, i32) {
    %c0_i32 = arith.constant 0 : i32
    %c0_i32_0 = arith.constant 0 : i32
    return %arg0, %c0_i32 : i32, i32
  }
  func.func @transform_1(%arg0: i32) -> (i32, i32) {
    %c0_i32 = arith.constant 0 : i32
    %c0_i32_0 = arith.constant 0 : i32
    %c0_i32_1 = arith.constant 0 : i32
    return %c0_i32, %c0_i32_0 : i32, i32
  }
  func.func @transform_2(%arg0: i32) -> (i32, i32) {
    %c0_i32 = arith.constant 0 : i32
    %c0_i32_0 = arith.constant 0 : i32
    %c0_i32_1 = arith.constant 0 : i32
    return %c0_i32, %c0_i32_0 : i32, i32
  }
  func.func @transform_3(%arg0: i32) -> (i32, i32) {
    %c0_i32 = arith.constant 0 : i32
    %c0_i32_0 = arith.constant 0 : i32
    return %arg0, %c0_i32 : i32, i32
  }
  func.func @transform_4(%arg0: i32) -> (i32, i32) {
    %c0_i32 = arith.constant 0 : i32
    %c0_i32_0 = arith.constant 0 : i32
    return %arg0, %c0_i32 : i32, i32
  }
  func.func @transform_5(%arg0: i32) -> (i32, i32) {
    %c0_i32 = arith.constant 0 : i32
    %c0_i32_0 = arith.constant 0 : i32
    return %arg0, %c0_i32 : i32, i32
  }
}

</mosaic_0001>

<llo_original>
// kernel: tpu_custom_call.1
$region0: #{tpu_custom_call.1}
  #allocation0 [shape = 'u32[]', space=smem, size = 0x4, offset = 0x4, fixed_abs, tag = 'smem constant byte address 0x4 - core index']
  #allocation1 [shape = 'u32[72,128]{1,0:T(1,128)}', space=vmem, size = 0x9000, scoped, tag = 'internal scratch']
  %s0 = inlined_call_operand.hbm [shape: f32[16,32], index: 0, kind: input, shape index: {}]
  %s1 = inlined_call_operand.hbm [shape: f32[32,96], index: 1, kind: input, shape index: {}]
  %s2 = inlined_call_operand.vmem [shape: f32[1,96], index: 2, kind: input, shape index: {}]
  %s3 = inlined_call_operand.hbm [shape: f32[16,32], index: 3, kind: output, shape index: {0}]
  %s4 = inlined_call_operand.hbm [shape: f32[16,32], index: 4, kind: output, shape index: {1}]
  %s5 = inlined_call_operand.hbm [shape: f32[16,32], index: 5, kind: output, shape index: {2}]
  %6 = xla_tuple %s3, %s4, %s5
  %s7 = sld [smem:[#allocation0]]
  $region46: #{tpu_custom_call.1} parent=0
    _
  %s9 = ssub.s32 1, %s7
  %s10 = scalar_select 0, %s9, %s7
  $region1: #{tpu_custom_call.1} parent=0
    #allocation2 [shape = 'u8[8192]{0}', space=vmem, size = 0x2000, scoped, tag = 'input window, operand 0, single buffered']
    #allocation3 [shape = 's32[1]{0}', space=sflag, size = 0x4, scoped, tag = 'scoped memory for tpu_custom_call.1']
    #allocation4 [shape = 's32[1]{0}', space=sflag, size = 0x4, scoped, tag = 'scoped memory for tpu_custom_call.1']
    #allocation5 [shape = 'u8[16384]{0}', space=vmem, size = 0x4000, scoped, tag = 'input window, operand 1, single buffered']
    #allocation6 [shape = 's32[1]{0}', space=sflag, size = 0x4, scoped, tag = 'scoped memory for tpu_custom_call.1']
    #allocation7 [shape = 'u8[8192]{0}', space=vmem, size = 0x2000, scoped, tag = 'output window, operand 0, single buffered']
    #allocation8 [shape = 'u8[8192]{0}', space=vmem, size = 0x2000, scoped, tag = 'output window, operand 1, single buffered']
    #allocation9 [shape = 's32[1]{0}', space=sflag, size = 0x4, scoped, tag = 'scoped memory for tpu_custom_call.1']
    #allocation10 [shape = 'u8[8192]{0}', space=vmem, size = 0x2000, scoped, tag = 'output window, operand 2, single buffered']
    %11 = vsyncpa [#allocation3], 0
    %12 = vsyncpa [#allocation6], 0
    %13 = vsyncpa [#allocation4], 0
    %14 = vsyncpa [#allocation9], 0
    // Predicated region
    $region2: #{tpu_custom_call.1} parent=1 // pred_check
      _
    $region3: #{tpu_custom_call.1} parent=1 // pred_check_branch
      %16 = sbr.rel (0) target = $region5
    $region4: #{tpu_custom_call.1} parent=1 // pred_region
      %18 = vsyncadd [#allocation3], 0
      %s19 = sshll.u32 %s0, 4
      %s20 = int_to_ptr.hbm [resolvable:$true] %s19
      %s21 = sshll.u32 [#allocation2], 4
      %s22 = int_to_ptr.vmem [resolvable:$true] %s21
      %27 = dma.hbm_to_vmem [thread:$0]  %s20, 256, %s22, [#allocation3], 128, 128, 8
    $region5: #{tpu_custom_call.1} parent=1 // pred_fallthru
      _
    // Predicated region
    $region6: #{tpu_custom_call.1} parent=1 // pred_check
      _
    $region7: #{tpu_custom_call.1} parent=1 // pred_check_branch
      %29 = sbr.rel (0) target = $region9
    $region8: #{tpu_custom_call.1} parent=1 // pred_region
      %31 = vsyncadd [#allocation6], 0
      %s32 = sshll.u32 %s1, 4
      %s33 = int_to_ptr.hbm [resolvable:$true] %s32
      %s34 = sshll.u32 [#allocation5], 4
      %s35 = int_to_ptr.vmem [resolvable:$true] %s34
      %40 = dma.hbm_to_vmem [thread:$0]  %s33, 512, %s35, [#allocation6], 128, 128, 8
    $region9: #{tpu_custom_call.1} parent=1 // pred_fallthru
      _
    // Predicated region
    $region10: #{tpu_custom_call.1} parent=1 // pred_check
      _
    $region11: #{tpu_custom_call.1} parent=1 // pred_check_branch
      %42 = sbr.rel (0) target = $region13
    $region12: #{tpu_custom_call.1} parent=1 // pred_region
      _
    $region13: #{tpu_custom_call.1} parent=1 // pred_fallthru
      _
    // Predicated region
    $region14: #{tpu_custom_call.1} parent=1 // pred_check
      _
    $region15: #{tpu_custom_call.1} parent=1 // pred_check_branch
      %44 = sbr.rel (0) target = $region17
    $region16: #{tpu_custom_call.1} parent=1 // pred_region
      %46 = dma.done [#allocation3], 256
    $region17: #{tpu_custom_call.1} parent=1 // pred_fallthru
      _
    // Predicated region
    $region18: #{tpu_custom_call.1} parent=1 // pred_check
      _
    $region19: #{tpu_custom_call.1} parent=1 // pred_check_branch
      %48 = sbr.rel (0) target = $region21
    $region20: #{tpu_custom_call.1} parent=1 // pred_region
      %50 = dma.done [#allocation6], 512
    $region21: #{tpu_custom_call.1} parent=1 // pred_fallthru
      _
    %v51 = vld [vmem:[#allocation2] sm:$0xff]
    %v52 = vld [vmem:[#allocation2 + $0x8] sm:$0xff]
    %v53 = vld [vmem:[#allocation5] sm:$0xff]
    %v54 = vld [vmem:[#allocation5 + $0x8] sm:$0xff]
    %v55 = vld [vmem:[#allocation5 + $0x10] sm:$0xff]
    %v56 = vld [vmem:[#allocation5 + $0x18] sm:$0xff]
    %v57 = vld [vmem:[%s2] sm:$0x1]
    %v59 = vperm.slane %v57, 0
    %vm61 = vcmask 261120
    %v63 = vsel %vm61, %v51, 0
    %v66 = vsel %vm61, %v52, 0
    %68 = vmatpush.msra.mxu0 0.0
    %69 = vmatpush.msra.mxu0 0.0
    %70 = vmatpush.msra.mxu0 0.0
    %71 = vmatpush.msra.mxu0 0.0
    %72 = vmatpush.msra.mxu0 0.0
    %73 = vmatpush.msra.mxu0 0.0
    %74 = vmatpush.msra.mxu0 0.0
    %75 = vmatpush.msra.mxu0 0.0
    %76 = vmatpush.msra.mxu0 0.0
    %77 = vmatpush.msra.mxu0 0.0
    %78 = vmatpush.msra.mxu0 0.0
    %79 = vmatpush.msra.mxu0 0.0
    %80 = vmatpush.msra.mxu0 %v56
    %81 = vmatpush.msra.mxu0 %v55
    %82 = vmatpush.msra.mxu0 %v54
    %83 = vmatpush.msra.mxu0 %v53
    %84 = vmatmul.f32.gmra.mxu0 %v63
    %v85 = vpop.f32.mrf.mxu0
    %v86 = vadd.f32 %v59, %v85
    %87 = vmatmul.f32.gmra.mxu0 %v66
    %v88 = vpop.f32.mrf.mxu0
    %v89 = vadd.f32 %v59, %v88
    %90 = vdwg.mxu0
    %v91 = vmul.f32 %v86, 0.35355338
    %v92 = vmul.f32 %v89, 0.35355338
    %93 = vst.msk [vmem:[#allocation7] sm:$0xff] %vm61, %v91
    %94 = vst.msk [vmem:[#allocation7 + $0x8] sm:$0xff] %vm61, %v92
    %97 = vrot.lane.b32.xlu0 %v86, 96
    %v98 = vpop.permute.xlu0 %97
    %99 = vrot.lane.b32.xlu0 %v89, 96
    %v100 = vpop.permute.xlu0 %99
    %103 = vst.msk [vmem:[#allocation8] sm:$0xff] %vm61, %v98
    %104 = vst.msk [vmem:[#allocation8 + $0x8] sm:$0xff] %vm61, %v100
    %105 = vrot.lane.b32.xlu0 %v86, 64
    %v106 = vpop.permute.xlu0 %105
    %107 = vrot.lane.b32.xlu0 %v89, 64
    %v108 = vpop.permute.xlu0 %107
    %111 = vst.msk [vmem:[#allocation10] sm:$0xff] %vm61, %v106
    %112 = vst.msk [vmem:[#allocation10 + $0x8] sm:$0xff] %vm61, %v108
    // Predicated region
    $region22: #{tpu_custom_call.1} parent=1 // pred_check
      _
    $region23: #{tpu_custom_call.1} parent=1 // pred_check_branch
      %114 = sbr.rel (0) target = $region25
    $region24: #{tpu_custom_call.1} parent=1 // pred_region
      %116 = vsyncadd [#allocation4], 0
      %s117 = sshll.u32 [#allocation7], 4
      %s118 = int_to_ptr.vmem [resolvable:$true] %s117
      %s119 = sshll.u32 %s3, 4
      %s120 = int_to_ptr.hbm [resolvable:$true] %s119
      %125 = dma.vmem_to_hbm [thread:$0]  %s118, 256, %s120, [#allocation4], 128, 128, 8
    $region25: #{tpu_custom_call.1} parent=1 // pred_fallthru
      _
    // Predicated region
    $region26: #{tpu_custom_call.1} parent=1 // pred_check
      _
    $region27: #{tpu_custom_call.1} parent=1 // pred_check_branch
      %127 = sbr.rel (0) target = $region29
    $region28: #{tpu_custom_call.1} parent=1 // pred_region
      %129 = vsyncadd [#allocation9], 0
      %s130 = sshll.u32 [#allocation8], 4
      %s131 = int_to_ptr.vmem [resolvable:$true] %s130
      %s132 = sshll.u32 %s4, 4
      %s133 = int_to_ptr.hbm [resolvable:$true] %s132
      %138 = dma.vmem_to_hbm [thread:$0]  %s131, 256, %s133, [#allocation9], 128, 128, 8
    $region29: #{tpu_custom_call.1} parent=1 // pred_fallthru
      _
    // Predicated region
    $region30: #{tpu_custom_call.1} parent=1 // pred_check
      _
    $region31: #{tpu_custom_call.1} parent=1 // pred_check_branch
      %140 = sbr.rel (0) target = $region33
    $region32: #{tpu_custom_call.1} parent=1 // pred_region
      %142 = vsyncadd [#allocation9], 0
      %s143 = sshll.u32 [#allocation10], 4
      %s144 = int_to_ptr.vmem [resolvable:$true] %s143
      %s145 = sshll.u32 %s5, 4
      %s146 = int_to_ptr.hbm [resolvable:$true] %s145
      %151 = dma.vmem_to_hbm [thread:$0]  %s144, 256, %s146, [#allocation9], 128, 128, 8
    $region33: #{tpu_custom_call.1} parent=1 // pred_fallthru
      _
    // Predicated region
    $region34: #{tpu_custom_call.1} parent=1 // pred_check
      _
    $region35: #{tpu_custom_call.1} parent=1 // pred_check_branch
      %153 = sbr.rel (0) target = $region37
    $region36: #{tpu_custom_call.1} parent=1 // pred_region
      %155 = dma.done [#allocation4], 256
    $region37: #{tpu_custom_call.1} parent=1 // pred_fallthru
      _
    // Predicated region
    $region38: #{tpu_custom_call.1} parent=1 // pred_check
      _
    $region39: #{tpu_custom_call.1} parent=1 // pred_check_branch
      %157 = sbr.rel (0) target = $region41
    $region40: #{tpu_custom_call.1} parent=1 // pred_region
      %159 = dma.done [#allocation9], 256
    $region41: #{tpu_custom_call.1} parent=1 // pred_fallthru
      _
    // Predicated region
    $region42: #{tpu_custom_call.1} parent=1 // pred_check
      _
    $region43: #{tpu_custom_call.1} parent=1 // pred_check_branch
      %161 = sbr.rel (0) target = $region45
    $region44: #{tpu_custom_call.1} parent=1 // pred_region
      %163 = dma.done [#allocation9], 256
    $region45: #{tpu_custom_call.1} parent=1 // pred_fallthru
      _
    %164 = vsyncpa [#allocation3], 1
    %165 = vsyncpa [#allocation6], 1
    %166 = vsyncpa [#allocation4], 1
    %167 = vsyncpa [#allocation9], 1

</llo_original>
